<compile_context>
chip_gen: v7x
topology: tpu7x:2x2x1
jax: 0.10.0
libtpu: 0.0.40
codegen_flags: <defaults>
</compile_context>

<pallas_src>
import jax
import jax.numpy as jnp
from jax.experimental import pallas as pl
from jax.experimental.pallas import tpu as pltpu


def _round_up(x: int, m: int) -> int:
    return ((x + m - 1) // m) * m


def _label_diff_kernel(a_ref, bt_ref, o_ref):
    # a_ref : (tm, D)  row tile of labels
    # bt_ref: (D, tn)  column tile of labels^T (lane-dense per d)
    # o_ref : (tm, tn) output tile
    a = a_ref[...].astype(jnp.float32)     # (tm, D)
    bt = bt_ref[...].astype(jnp.float32)   # (D, tn)
    tm, D = a.shape
    tn = bt.shape[1]

    acc = jnp.zeros((tm, tn), jnp.float32)
    # D is small and static: unrolled at trace time, fully lane-dense VPU work.
    for d in range(D):
        acc = acc + jnp.abs(a[:, d:d + 1] - bt[d:d + 1, :])

    o_ref[...] = acc.astype(o_ref.dtype)


def label_difference_l1(labels: jax.Array, *, tm: int = 256, tn: int = 1024) -> jax.Array:
    """Pairwise L1 label distance matrix (N, N), computed with a Pallas TPU kernel."""
    N, D = labels.shape
    out_dtype = labels.dtype

    # Effective tile sizes: sublane axis multiple of 8, lane axis multiple of 128,
    # shrunk for small N. Pad N up to a whole number of tiles on each output axis.
    tm_eff = min(tm, _round_up(N, 8))
    tn_eff = min(tn, _round_up(N, 128))
    Nm = _round_up(N, tm_eff)
    Nn = _round_up(N, tn_eff)

    a = labels
    if Nm != N:
        a = jnp.pad(a, ((0, Nm - N), (0, 0)))

    bt = labels.T                          # (D, N): per-d rows are lane-dense
    if Nn != N:
        bt = jnp.pad(bt, ((0, 0), (0, Nn - N)))

    cost = pl.CostEstimate(
        flops=3 * N * N * D,               # sub + abs + add per (i, j, d)
        transcendentals=0,
        bytes_accessed=4 * N * N + 8 * N * D,
    )

    out = pl.pallas_call(
        _label_diff_kernel,
        out_shape=jax.ShapeDtypeStruct((Nm, Nn), out_dtype),
        grid=(Nm // tm_eff, Nn // tn_eff),
        in_specs=[
            pl.BlockSpec((tm_eff, D), lambda i, j: (i, 0)),   # row tile of labels
            pl.BlockSpec((D, tn_eff), lambda i, j: (0, j)),   # col tile of labels^T
        ],
        out_specs=pl.BlockSpec((tm_eff, tn_eff), lambda i, j: (i, j)),
        compiler_params=pltpu.CompilerParams(
            dimension_semantics=("parallel", "parallel"),     # shards across TCs on v7x
        ),
        cost_estimate=cost,
    )(a, bt)

    if (Nm, Nn) != (N, N):
        out = out[:N, :N]
    return out


if __name__ == "__main__":
    key = jax.random.PRNGKey(0)

    # Small synthetic case (exercises the padding / shrunken-tile path).
    N, D = 16, 8
    labels = jax.random.uniform(key, (N, D), dtype=jnp.float32) * 10.0
    out = jax.block_until_ready(label_difference_l1(labels))
    ref = jnp.abs(labels[:, None, :] - labels[None, :, :]).sum(axis=-1)
    assert out.shape == (N, N)
    assert jnp.allclose(out, ref, atol=1e-5, rtol=1e-5), "mismatch vs reference (small)"

    # Slightly larger case (exercises the multi-tile 2D grid path).
    N2, D2 = 384, 8
    labels2 = jax.random.uniform(jax.random.PRNGKey(1), (N2, D2), dtype=jnp.float32) * 10.0
    out2 = jax.block_until_ready(label_difference_l1(labels2))
    ref2 = jnp.abs(labels2[:, None, :] - labels2[None, :, :]).sum(axis=-1)
    assert out2.shape == (N2, N2)
    assert jnp.allclose(out2, ref2, atol=1e-4, rtol=1e-5), "mismatch vs reference (tiled)"

    # Typical AgeDB case: scalar labels (D = 1).
    N3, D3 = 200, 1
    labels3 = jax.random.uniform(jax.random.PRNGKey(2), (N3, D3), dtype=jnp.float32) * 100.0
    out3 = jax.block_until_ready(label_difference_l1(labels3))
    ref3 = jnp.abs(labels3[:, None, :] - labels3[None, :, :]).sum(axis=-1)
    assert out3.shape == (N3, N3)
    assert jnp.allclose(out3, ref3, atol=1e-4, rtol=1e-5), "mismatch vs reference (D=1)"

    print("KERNEL_OK")
</pallas_src>

<mosaic_0001>
module attributes {stable_mosaic.version = 11 : i64} {
  func.func @_label_diff_kernel(%arg0: i32, %arg1: i32, %arg2: memref<16x8xf32, #tpu.memory_space<vmem>>, %arg3: memref<8x128xf32, #tpu.memory_space<vmem>>, %arg4: memref<16x128xf32, #tpu.memory_space<vmem>>) attributes {dimension_semantics = [#tpu.dimension_semantics<parallel>, #tpu.dimension_semantics<parallel>], iteration_bounds = array<i64: 1, 1>, scalar_prefetch = 0 : i64, scratch_operands = 0 : i64, tpu.core_type = #tpu.core_type<tc>, window_params = [{transform_indices = @transform_0, window_bounds = array<i64: 16, 8>}, {transform_indices = @transform_1, window_bounds = array<i64: 8, 128>}, {transform_indices = @transform_2, window_bounds = array<i64: 16, 128>}]} {
    %c0 = arith.constant 0 : index
    %c0_0 = arith.constant 0 : index
    %0 = vector.load %arg2[%c0, %c0_0] : memref<16x8xf32, #tpu.memory_space<vmem>>, vector<16x8xf32>
    %c0_1 = arith.constant 0 : index
    %c0_2 = arith.constant 0 : index
    %1 = vector.load %arg3[%c0_1, %c0_2] : memref<8x128xf32, #tpu.memory_space<vmem>>, vector<8x128xf32>
    %cst = arith.constant 0.000000e+00 : f32
    %2 = vector.broadcast %cst : f32 to vector<16x128xf32>
    %3 = vector.extract_strided_slice %0 {offsets = [0, 0], sizes = [16, 1], strides = [1, 1]} : vector<16x8xf32> to vector<16x1xf32>
    %4 = vector.extract_strided_slice %1 {offsets = [0, 0], sizes = [1, 128], strides = [1, 1]} : vector<8x128xf32> to vector<1x128xf32>
    %5 = vector.broadcast %3 : vector<16x1xf32> to vector<16x128xf32>
    %6 = vector.broadcast %4 : vector<1x128xf32> to vector<16x128xf32>
    %7 = arith.subf %5, %6 : vector<16x128xf32>
    %8 = math.absf %7 : vector<16x128xf32>
    %9 = arith.addf %2, %8 : vector<16x128xf32>
    %10 = vector.extract_strided_slice %0 {offsets = [0, 1], sizes = [16, 1], strides = [1, 1]} : vector<16x8xf32> to vector<16x1xf32>
    %11 = vector.extract_strided_slice %1 {offsets = [1, 0], sizes = [1, 128], strides = [1, 1]} : vector<8x128xf32> to vector<1x128xf32>
    %12 = vector.broadcast %10 : vector<16x1xf32> to vector<16x128xf32>
    %13 = vector.broadcast %11 : vector<1x128xf32> to vector<16x128xf32>
    %14 = arith.subf %12, %13 : vector<16x128xf32>
    %15 = math.absf %14 : vector<16x128xf32>
    %16 = arith.addf %9, %15 : vector<16x128xf32>
    %17 = vector.extract_strided_slice %0 {offsets = [0, 2], sizes = [16, 1], strides = [1, 1]} : vector<16x8xf32> to vector<16x1xf32>
    %18 = vector.extract_strided_slice %1 {offsets = [2, 0], sizes = [1, 128], strides = [1, 1]} : vector<8x128xf32> to vector<1x128xf32>
    %19 = vector.broadcast %17 : vector<16x1xf32> to vector<16x128xf32>
    %20 = vector.broadcast %18 : vector<1x128xf32> to vector<16x128xf32>
    %21 = arith.subf %19, %20 : vector<16x128xf32>
    %22 = math.absf %21 : vector<16x128xf32>
    %23 = arith.addf %16, %22 : vector<16x128xf32>
    %24 = vector.extract_strided_slice %0 {offsets = [0, 3], sizes = [16, 1], strides = [1, 1]} : vector<16x8xf32> to vector<16x1xf32>
    %25 = vector.extract_strided_slice %1 {offsets = [3, 0], sizes = [1, 128], strides = [1, 1]} : vector<8x128xf32> to vector<1x128xf32>
    %26 = vector.broadcast %24 : vector<16x1xf32> to vector<16x128xf32>
    %27 = vector.broadcast %25 : vector<1x128xf32> to vector<16x128xf32>
    %28 = arith.subf %26, %27 : vector<16x128xf32>
    %29 = math.absf %28 : vector<16x128xf32>
    %30 = arith.addf %23, %29 : vector<16x128xf32>
    %31 = vector.extract_strided_slice %0 {offsets = [0, 4], sizes = [16, 1], strides = [1, 1]} : vector<16x8xf32> to vector<16x1xf32>
    %32 = vector.extract_strided_slice %1 {offsets = [4, 0], sizes = [1, 128], strides = [1, 1]} : vector<8x128xf32> to vector<1x128xf32>
    %33 = vector.broadcast %31 : vector<16x1xf32> to vector<16x128xf32>
    %34 = vector.broadcast %32 : vector<1x128xf32> to vector<16x128xf32>
    %35 = arith.subf %33, %34 : vector<16x128xf32>
    %36 = math.absf %35 : vector<16x128xf32>
    %37 = arith.addf %30, %36 : vector<16x128xf32>
    %38 = vector.extract_strided_slice %0 {offsets = [0, 5], sizes = [16, 1], strides = [1, 1]} : vector<16x8xf32> to vector<16x1xf32>
    %39 = vector.extract_strided_slice %1 {offsets = [5, 0], sizes = [1, 128], strides = [1, 1]} : vector<8x128xf32> to vector<1x128xf32>
    %40 = vector.broadcast %38 : vector<16x1xf32> to vector<16x128xf32>
    %41 = vector.broadcast %39 : vector<1x128xf32> to vector<16x128xf32>
    %42 = arith.subf %40, %41 : vector<16x128xf32>
    %43 = math.absf %42 : vector<16x128xf32>
    %44 = arith.addf %37, %43 : vector<16x128xf32>
    %45 = vector.extract_strided_slice %0 {offsets = [0, 6], sizes = [16, 1], strides = [1, 1]} : vector<16x8xf32> to vector<16x1xf32>
    %46 = vector.extract_strided_slice %1 {offsets = [6, 0], sizes = [1, 128], strides = [1, 1]} : vector<8x128xf32> to vector<1x128xf32>
    %47 = vector.broadcast %45 : vector<16x1xf32> to vector<16x128xf32>
    %48 = vector.broadcast %46 : vector<1x128xf32> to vector<16x128xf32>
    %49 = arith.subf %47, %48 : vector<16x128xf32>
    %50 = math.absf %49 : vector<16x128xf32>
    %51 = arith.addf %44, %50 : vector<16x128xf32>
    %52 = vector.extract_strided_slice %0 {offsets = [0, 7], sizes = [16, 1], strides = [1, 1]} : vector<16x8xf32> to vector<16x1xf32>
    %53 = vector.extract_strided_slice %1 {offsets = [7, 0], sizes = [1, 128], strides = [1, 1]} : vector<8x128xf32> to vector<1x128xf32>
    %54 = vector.broadcast %52 : vector<16x1xf32> to vector<16x128xf32>
    %55 = vector.broadcast %53 : vector<1x128xf32> to vector<16x128xf32>
    %56 = arith.subf %54, %55 : vector<16x128xf32>
    %57 = math.absf %56 : vector<16x128xf32>
    %58 = arith.addf %51, %57 : vector<16x128xf32>
    %c0_3 = arith.constant 0 : index
    %c0_4 = arith.constant 0 : index
    %59 = vector.load %arg4[%c0_3, %c0_4] : memref<16x128xf32, #tpu.memory_space<vmem>>, vector<16x128xf32>
    tpu.vector_store %arg4[%c0_3, %c0_4], %58 {strides = array<i32>} : memref<16x128xf32, #tpu.memory_space<vmem>>, vector<16x128xf32>,
    return
  }
  func.func @transform_0(%arg0: i32, %arg1: i32) -> (i32, i32) {
    %c0_i32 = arith.constant 0 : i32
    %c0_i32_0 = arith.constant 0 : i32
    return %arg0, %c0_i32 : i32, i32
  }
  func.func @transform_1(%arg0: i32, %arg1: i32) -> (i32, i32) {
    %c0_i32 = arith.constant 0 : i32
    %c0_i32_0 = arith.constant 0 : i32
    return %c0_i32, %arg1 : i32, i32
  }
  func.func @transform_2(%arg0: i32, %arg1: i32) -> (i32, i32) {
    %c0_i32 = arith.constant 0 : i32
    return %arg0, %arg1 : i32, i32
  }
}

</mosaic_0001>

<llo_original>
// kernel: tpu_custom_call.1
$region0: #{tpu_custom_call.1}
  #allocation0 [shape = 'u32[]', space=smem, size = 0x4, offset = 0x4, fixed_abs, tag = 'smem constant byte address 0x4 - core index']
  #allocation1 [shape = 'u32[144,128]{1,0:T(1,128)}', space=vmem, size = 0x12000, scoped, tag = 'internal scratch']
  %s0 = inlined_call_operand.vmem [shape: f32[16,8], index: 0, kind: input, shape index: {}]
  %s1 = inlined_call_operand.vmem [shape: f32[8,128], index: 1, kind: input, shape index: {}]
  %s2 = inlined_call_operand.hbm [shape: f32[16,128], index: 2, kind: output, shape index: {}]
  %s3 = sld [smem:[#allocation0]]
  $region18: #{tpu_custom_call.1} parent=0
    _
  %s5 = ssub.s32 1, %s3
  %s6 = scalar_select 0, %s5, %s3
  $region1: #{tpu_custom_call.1} parent=0
    #allocation2 [shape = 'u8[8192]{0}', space=vmem, size = 0x2000, scoped, tag = 'output window, operand 0, single buffered']
    #allocation3 [shape = 's32[1]{0}', space=sflag, size = 0x4, scoped, tag = 'scoped memory for tpu_custom_call.1']
    %7 = vsyncpa [#allocation3], 0
    // Predicated region
    $region2: #{tpu_custom_call.1} parent=1 // pred_check
      _
    $region3: #{tpu_custom_call.1} parent=1 // pred_check_branch
      %9 = sbr.rel (0) target = $region5
    $region4: #{tpu_custom_call.1} parent=1 // pred_region
      _
    $region5: #{tpu_custom_call.1} parent=1 // pred_fallthru
      _
    // Predicated region
    $region6: #{tpu_custom_call.1} parent=1 // pred_check
      _
    $region7: #{tpu_custom_call.1} parent=1 // pred_check_branch
      %11 = sbr.rel (0) target = $region9
    $region8: #{tpu_custom_call.1} parent=1 // pred_region
      _
    $region9: #{tpu_custom_call.1} parent=1 // pred_fallthru
      _
    %v12 = vld [vmem:[%s0] sm:$0xff]
    %v13 = vld [vmem:[%s0 + $0x8] sm:$0xff]
    %v14 = vld [vmem:[%s1] sm:$0xff]
    %16 = vset.pattern.permute.xlu0 0
    %17 = vperm.xlu0 %16, %v12
    %v18 = vpop.permute.xlu0 %17
    %21 = vset.pattern.permute.xlu0 0
    %22 = vperm.xlu0 %21, %v13
    %v23 = vpop.permute.xlu0 %22
    %v25 = vlaneseq
    %v26 = vshrl.u32 %v25, 7
    %v27 = vsub.s32 0, %v26
    %v28 = vrot.slane %v14, %v27
    %v29 = vsub.f32 %v18, %v28
    %v30 = vsub.f32 %v23, %v28
    %v31 = vand.u32 2147483647, %v29
    %v32 = vand.u32 2147483647, %v30
    %v33 = vadd.f32 %v31, 0.0
    %v34 = vadd.f32 %v32, 0.0
    %35 = vset.pattern.permute.xlu0 1
    %36 = vperm.xlu0 %35, %v12
    %v37 = vpop.permute.xlu0 %36
    %39 = vset.pattern.permute.xlu0 1
    %40 = vperm.xlu0 %39, %v13
    %v41 = vpop.permute.xlu0 %40
    %v43 = vlaneseq
    %v44 = vshrl.u32 %v43, 7
    %v45 = vsub.s32 1, %v44
    %v46 = vrot.slane %v14, %v45
    %v47 = vsub.f32 %v37, %v46
    %v48 = vsub.f32 %v41, %v46
    %v49 = vand.u32 2147483647, %v47
    %v50 = vand.u32 2147483647, %v48
    %v51 = vadd.f32 %v33, %v49
    %v52 = vadd.f32 %v34, %v50
    %53 = vset.pattern.permute.xlu0 2
    %54 = vperm.xlu0 %53, %v12
    %v55 = vpop.permute.xlu0 %54
    %57 = vset.pattern.permute.xlu0 2
    %58 = vperm.xlu0 %57, %v13
    %v59 = vpop.permute.xlu0 %58
    %v61 = vlaneseq
    %v62 = vshrl.u32 %v61, 7
    %v63 = vsub.s32 2, %v62
    %v64 = vrot.slane %v14, %v63
    %v65 = vsub.f32 %v55, %v64
    %v66 = vsub.f32 %v59, %v64
    %v67 = vand.u32 2147483647, %v65
    %v68 = vand.u32 2147483647, %v66
    %v69 = vadd.f32 %v51, %v67
    %v70 = vadd.f32 %v52, %v68
    %71 = vset.pattern.permute.xlu0 3
    %72 = vperm.xlu0 %71, %v12
    %v73 = vpop.permute.xlu0 %72
    %75 = vset.pattern.permute.xlu0 3
    %76 = vperm.xlu0 %75, %v13
    %v77 = vpop.permute.xlu0 %76
    %v79 = vlaneseq
    %v80 = vshrl.u32 %v79, 7
    %v81 = vsub.s32 3, %v80
    %v82 = vrot.slane %v14, %v81
    %v83 = vsub.f32 %v73, %v82
    %v84 = vsub.f32 %v77, %v82
    %v85 = vand.u32 2147483647, %v83
    %v86 = vand.u32 2147483647, %v84
    %v87 = vadd.f32 %v69, %v85
    %v88 = vadd.f32 %v70, %v86
    %89 = vset.pattern.permute.xlu0 4
    %90 = vperm.xlu0 %89, %v12
    %v91 = vpop.permute.xlu0 %90
    %93 = vset.pattern.permute.xlu0 4
    %94 = vperm.xlu0 %93, %v13
    %v95 = vpop.permute.xlu0 %94
    %v97 = vlaneseq
    %v98 = vshrl.u32 %v97, 7
    %v99 = vsub.s32 4, %v98
    %v100 = vrot.slane %v14, %v99
    %v101 = vsub.f32 %v91, %v100
    %v102 = vsub.f32 %v95, %v100
    %v103 = vand.u32 2147483647, %v101
    %v104 = vand.u32 2147483647, %v102
    %v105 = vadd.f32 %v87, %v103
    %v106 = vadd.f32 %v88, %v104
    %107 = vset.pattern.permute.xlu0 5
    %108 = vperm.xlu0 %107, %v12
    %v109 = vpop.permute.xlu0 %108
    %111 = vset.pattern.permute.xlu0 5
    %112 = vperm.xlu0 %111, %v13
    %v113 = vpop.permute.xlu0 %112
    %v115 = vlaneseq
    %v116 = vshrl.u32 %v115, 7
    %v117 = vsub.s32 5, %v116
    %v118 = vrot.slane %v14, %v117
    %v119 = vsub.f32 %v109, %v118
    %v120 = vsub.f32 %v113, %v118
    %v121 = vand.u32 2147483647, %v119
    %v122 = vand.u32 2147483647, %v120
    %v123 = vadd.f32 %v105, %v121
    %v124 = vadd.f32 %v106, %v122
    %125 = vset.pattern.permute.xlu0 6
    %126 = vperm.xlu0 %125, %v12
    %v127 = vpop.permute.xlu0 %126
    %129 = vset.pattern.permute.xlu0 6
    %130 = vperm.xlu0 %129, %v13
    %v131 = vpop.permute.xlu0 %130
    %v133 = vlaneseq
    %v134 = vshrl.u32 %v133, 7
    %v135 = vsub.s32 6, %v134
    %v136 = vrot.slane %v14, %v135
    %v137 = vsub.f32 %v127, %v136
    %v138 = vsub.f32 %v131, %v136
    %v139 = vand.u32 2147483647, %v137
    %v140 = vand.u32 2147483647, %v138
    %v141 = vadd.f32 %v123, %v139
    %v142 = vadd.f32 %v124, %v140
    %143 = vset.pattern.permute.xlu0 7
    %144 = vperm.xlu0 %143, %v12
    %v145 = vpop.permute.xlu0 %144
    %147 = vset.pattern.permute.xlu0 7
    %148 = vperm.xlu0 %147, %v13
    %v149 = vpop.permute.xlu0 %148
    %v151 = vlaneseq
    %v152 = vshrl.u32 %v151, 7
    %v153 = vsub.s32 7, %v152
    %v154 = vrot.slane %v14, %v153
    %v155 = vsub.f32 %v145, %v154
    %v156 = vsub.f32 %v149, %v154
    %v157 = vand.u32 2147483647, %v155
    %v158 = vand.u32 2147483647, %v156
    %v159 = vadd.f32 %v141, %v157
    %v160 = vadd.f32 %v142, %v158
    %161 = vst [vmem:[#allocation2] sm:$0xff] %v159
    %162 = vst [vmem:[#allocation2 + $0x8] sm:$0xff] %v160
    // Predicated region
    $region10: #{tpu_custom_call.1} parent=1 // pred_check
      _
    $region11: #{tpu_custom_call.1} parent=1 // pred_check_branch
      %164 = sbr.rel (0) target = $region13
    $region12: #{tpu_custom_call.1} parent=1 // pred_region
      %s166 = ssub.s32 256, 256
      %167 = vsyncadd [#allocation3], %s166
      %s168 = sshll.u32 [#allocation2], 4
      %s169 = int_to_ptr.vmem [resolvable:$true] %s168
      %174 = dma.vmem_to_hbm [thread:$0]  %s169, 256, %s2, [#allocation3], 128, 128, 8
    $region13: #{tpu_custom_call.1} parent=1 // pred_fallthru
      _
    // Predicated region
    $region14: #{tpu_custom_call.1} parent=1 // pred_check
      _
    $region15: #{tpu_custom_call.1} parent=1 // pred_check_branch
      %176 = sbr.rel (0) target = $region17
    $region16: #{tpu_custom_call.1} parent=1 // pred_region
      %177 = dma.done [#allocation3], 256
    $region17: #{tpu_custom_call.1} parent=1 // pred_fallthru
      _
    %178 = vsyncpa [#allocation3], 1

</llo_original>
